<compile_context>
chip_gen: v7x
topology: tpu7x:2x2x1
jax: 0.10.0
libtpu: 0.0.40
codegen_flags: <defaults>
</compile_context>

<pallas_src>
import math

import numpy as np
import jax
import jax.numpy as jnp
from jax.experimental import pallas as pl
from jax.experimental.pallas import tpu as pltpu

LOG_2PI = math.log(2.0 * math.pi)
_SQRT2 = math.sqrt(2.0)


# ---------------------------------------------------------------------------
# In-kernel standard-normal generator: HW PRNG bits -> uniform -> erfinv (Giles 2010).
# Uses only VPU ops + one log + one sqrt (EUP), so it lowers on all TPU generations.
# ---------------------------------------------------------------------------
_ERFINV_SMALL = (3.43273939e-07, -3.5233877e-06, -4.39150654e-06, 2.1858087e-04,
                 -1.25372503e-03, -4.17768164e-03, 2.46640727e-01, 1.50140941e+00)
_ERFINV_BIG = (1.00950558e-04, 1.34934322e-03, -3.67342844e-03, 5.73950773e-03,
               -7.6224613e-03, 9.43887047e-03, 1.00167406e+00, 2.83297682e+00)


def _random_normal(shape):
    bits = pltpu.prng_random_bits(shape)
    if bits.dtype != jnp.int32:                       # trace-time dtype normalization
        bits = pltpu.bitcast(bits, jnp.int32)
    # 23 uniform bits, centered in the bucket -> u in (0, 1), x in (-1, 1)
    u = ((bits & 0x7FFFFF).astype(jnp.float32) + 0.5) * (1.0 / 8388608.0)
    x = 2.0 * u - 1.0
    w = -jnp.log((1.0 - x) * (1.0 + x))
    ws = w - 2.5
    p_small = jnp.float32(2.81022636e-08)
    for c in _ERFINV_SMALL:
        p_small = p_small * ws + c
    wb = jnp.sqrt(w) - 3.0
    p_big = jnp.float32(-2.00214257e-04)
    for c in _ERFINV_BIG:
        p_big = p_big * wb + c
    p = jnp.where(w < 5.0, p_small, p_big)
    return jnp.float32(_SQRT2) * p * x


# ---------------------------------------------------------------------------
# Pallas kernels (operate on (B, R, 128) row-major views of (B, D) tensors).
# `scale_ref` is the ALREADY-exponentiated scale (exp hoisted to the wrapper).
# Hot loops are pure elementwise VPU work; reductions are deferred to the last step
# and emitted as lane-dense (TB, 128) partials (finished on the XLA side).
# ---------------------------------------------------------------------------
def _sample_gauss_kernel(seed_ref, scale_ref, x_ref, part_ref, acc_ref):
    """z ~ N(0,1) generated in-kernel; x = z*scale; acc += z*z (no HBM z traffic)."""
    b = pl.program_id(0)
    k = pl.program_id(1)

    @pl.when(k == 0)
    def _():
        acc_ref[...] = jnp.zeros_like(acc_ref)

    # per-block stream: deterministic regardless of megacore scheduling
    pltpu.prng_seed(seed_ref[0] + b * 1000003 + k * 19937)
    z = _random_normal(x_ref.shape)                      # (TB, TR, 128) f32
    x_ref[...] = (z * scale_ref[...]).astype(x_ref.dtype)
    acc_ref[...] += z * z                                # pure VPU, no reductions

    @pl.when(k == pl.num_programs(1) - 1)
    def _():
        part_ref[...] = -0.5 * jnp.sum(acc_ref[...], axis=1)   # (TB, 128) lane partials


def _scaled_gauss_kernel(scale_ref, x_ref, part_ref, acc_ref):
    """acc += (x*scale)^2 elementwise; single deferred reduce at the last step."""
    k = pl.program_id(1)

    @pl.when(k == 0)
    def _():
        acc_ref[...] = jnp.zeros_like(acc_ref)

    z = x_ref[...].astype(jnp.float32) * scale_ref[...]
    acc_ref[...] += z * z

    @pl.when(k == pl.num_programs(1) - 1)
    def _():
        part_ref[...] = -0.5 * jnp.sum(acc_ref[...], axis=1)


def _affine_kernel(scale_ref, v_ref, y_ref):
    """y = v * scale; log|det J| is hoisted to the wrapper (data independent)."""
    y_ref[...] = (v_ref[...].astype(jnp.float32) * scale_ref[...]).astype(y_ref.dtype)


# ---------------------------------------------------------------------------
# Tiling / VMEM planning (generation aware, budget derived from actual tiles).
# ---------------------------------------------------------------------------
def _rows(a2d):
    B, D = a2d.shape
    assert D % 128 == 0, "feature dim must be a multiple of 128 (lane width)"
    return a2d.reshape(B, D // 128, 128)


def _vmem_capacity_bytes():
    try:
        info = pltpu.get_tpu_info()
        cap = int(getattr(info, "vmem_capacity_bytes", 0) or 0)
        if cap > 0:
            return cap
    except Exception:
        pass
    return 64 * 1024 * 1024          # conservative default (v7x per-core VMEM)


def _pick_batch_tile(B):
    # Keep >= 2 batch grid steps when B >= 16 so the "parallel" batch axis can shard
    # across v7x's two TensorCores.  TB must be a multiple of 8 (it is the sublane dim
    # of the (TB, 128) lane-partial output block) unless it covers the whole batch.
    if B < 16:
        return B
    limit = min(256, B // 2)
    for tb in range(limit - limit % 8, 7, -8):
        if B % tb == 0:
            return tb
    return B


def _pick_row_tile(R, TB, budget_bytes):
    # TR must be a multiple of 8 (sublane tile) or equal R (full extent).
    max_tr = max(8, budget_bytes // (TB * 128 * 4))
    if R <= max_tr:
        return R
    best = 0
    tr = 8
    while tr <= max_tr:
        if R % tr == 0:
            best = tr
        tr += 8
    if best:
        return best
    # No multiple-of-8 divisor under the soft budget: take the largest one at all
    # (vmem_limit below is sized from the TRUE block, so this stays safe), else R.
    for tr in range((R // 8) * 8, 7, -8):
        if R % tr == 0:
            return tr
    return R


def _plan(B, R, itemsize, n_streamed, n_scratch):
    """Pick (TB, TR, vmem_limit).  n_streamed = # of double-buffered (TB,TR,128) blocks
    (inputs + outputs), n_scratch = # of single-buffered f32 scratch blocks."""
    cap = _vmem_capacity_bytes()
    block_budget = (4 << 20) if cap >= (96 << 20) else (2 << 20)
    TB = _pick_batch_tile(B)
    TR = _pick_row_tile(R, TB, block_budget)
    blk = TB * TR * 128
    working = (2 * (n_streamed * blk * itemsize      # double-buffered big blocks
                    + TR * 128 * 4                   # scale block
                    + TB * 128 * 4)                  # lane-partial block
               + n_scratch * blk * 4)                # accumulator scratch
    limit = max(32 << 20, 2 * working + (4 << 20))
    limit = min(limit, int(cap * 0.9))
    limit = max(limit, working + (2 << 20))          # never below the true working set
    return TB, TR, int(limit)


# ---------------------------------------------------------------------------
# Kernel wrappers
# ---------------------------------------------------------------------------
def sample_scaled_gauss(seed, B, scale, out_dtype=jnp.float32):
    """Fused sampler: z ~ N(0,1) generated in-kernel, x = z*scale written once,
    quad[b] = sum_d -0.5*z[b,d]^2 accumulated in VMEM (z never hits HBM)."""
    D = scale.shape[0]
    assert D % 128 == 0
    R = D // 128
    s3 = scale.astype(jnp.float32).reshape(1, R, 128)
    itm = np.dtype(out_dtype).itemsize
    TB, TR, vmem_limit = _plan(B, R, itm, n_streamed=1, n_scratch=1)
    seed_arr = jnp.asarray([int(seed)], dtype=jnp.int32)
    x3, part = pl.pallas_call(
        _sample_gauss_kernel,
        out_shape=(
            jax.ShapeDtypeStruct((B, R, 128), out_dtype),
            jax.ShapeDtypeStruct((B, 128), jnp.float32),
        ),
        grid_spec=pltpu.PrefetchScalarGridSpec(
            num_scalar_prefetch=1,
            grid=(B // TB, R // TR),
            in_specs=[pl.BlockSpec((1, TR, 128), lambda b, k, seed: (0, k, 0))],
            out_specs=[
                pl.BlockSpec((TB, TR, 128), lambda b, k, seed: (b, k, 0)),
                pl.BlockSpec((TB, 128), lambda b, k, seed: (b, 0)),
            ],
            scratch_shapes=[pltpu.VMEM((TB, TR, 128), jnp.float32)],
        ),
        compiler_params=pltpu.CompilerParams(
            dimension_semantics=("parallel", "arbitrary"),
            vmem_limit_bytes=vmem_limit,
        ),
        cost_estimate=pl.CostEstimate(
            flops=int(45 * B * D),
            transcendentals=int(2 * B * D),
            bytes_accessed=int(B * D * itm + D * 4 + B * 128 * 4),
        ),
    )(seed_arr, s3)
    quad = jnp.sum(part, axis=-1)        # tiny (B,128) lane reduce finished by XLA
    return x3.reshape(B, D), quad


def scaled_gauss_quadratic(x2d, scale):
    """quad[b] = sum_d -0.5 * (x[b,d]*scale[d])^2; never materializes z in HBM."""
    B, D = x2d.shape
    R = D // 128
    x3 = _rows(x2d)
    s3 = scale.astype(jnp.float32).reshape(1, R, 128)
    itm = x2d.dtype.itemsize
    TB, TR, vmem_limit = _plan(B, R, itm, n_streamed=1, n_scratch=1)
    part = pl.pallas_call(
        _scaled_gauss_kernel,
        out_shape=jax.ShapeDtypeStruct((B, 128), jnp.float32),
        grid=(B // TB, R // TR),
        in_specs=[
            pl.BlockSpec((1, TR, 128), lambda b, k: (0, k, 0)),
            pl.BlockSpec((TB, TR, 128), lambda b, k: (b, k, 0)),
        ],
        out_specs=pl.BlockSpec((TB, 128), lambda b, k: (b, 0)),
        scratch_shapes=[pltpu.VMEM((TB, TR, 128), jnp.float32)],
        compiler_params=pltpu.CompilerParams(
            dimension_semantics=("parallel", "arbitrary"),
            vmem_limit_bytes=vmem_limit,
        ),
        cost_estimate=pl.CostEstimate(
            flops=int(3 * B * D),
            transcendentals=0,
            bytes_accessed=int(B * D * itm + (B // TB) * D * 4 + B * 128 * 4),
        ),
    )(s3, x3)
    return jnp.sum(part, axis=-1)


def affine_transform(v2d, scale):
    """Elementwise v * scale (scale pre-exponentiated; log|det J| hoisted to caller)."""
    B, D = v2d.shape
    R = D // 128
    v3 = _rows(v2d)
    s3 = scale.astype(jnp.float32).reshape(1, R, 128)
    itm = v2d.dtype.itemsize
    TB, TR, vmem_limit = _plan(B, R, itm, n_streamed=2, n_scratch=0)
    y3 = pl.pallas_call(
        _affine_kernel,
        out_shape=jax.ShapeDtypeStruct((B, R, 128), v2d.dtype),
        grid=(B // TB, R // TR),
        in_specs=[
            pl.BlockSpec((1, TR, 128), lambda b, k: (0, k, 0)),
            pl.BlockSpec((TB, TR, 128), lambda b, k: (b, k, 0)),
        ],
        out_specs=pl.BlockSpec((TB, TR, 128), lambda b, k: (b, k, 0)),
        compiler_params=pltpu.CompilerParams(
            dimension_semantics=("parallel", "parallel"),   # no accumulator: fully parallel
            vmem_limit_bytes=vmem_limit,
        ),
        cost_estimate=pl.CostEstimate(
            flops=int(B * D),
            transcendentals=0,
            bytes_accessed=int(2 * B * D * itm + D * 4),
        ),
    )(s3, v3)
    return y3.reshape(B, D)


# ---------------------------------------------------------------------------
# Prior (standard Gaussian) - density evaluated with the Pallas reduction kernel.
# ---------------------------------------------------------------------------
class GaussianPrior:
    def __init__(self, event_shape, key):
        self.event_shape = tuple(event_shape)
        self._key = key
        # TODO(synk): Python-side counter gives distinct draws per eager call; it would
        # be constant-folded if sample() were wrapped in jax.jit.
        self._n_calls = 0

    def _next_key(self):
        key = jax.random.fold_in(self._key, self._n_calls)
        self._n_calls += 1
        return key

    def next_seed(self):
        # distinct deterministic int32 seed per call, for the in-kernel PRNG
        return int(jax.random.randint(self._next_key(), (), 0, 2**31 - 1))

    def sample(self, batchSize):
        # generic (non-fused) path; RNG stays in plain JAX glue
        return jax.random.normal(self._next_key(),
                                 (batchSize,) + self.event_shape, dtype=jnp.float32)

    def logProbability(self, z):
        B = z.shape[0]
        z2d = z.reshape(B, -1)
        D = z2d.shape[1]
        quad = scaled_gauss_quadratic(z2d, jnp.ones((D,), jnp.float32))
        return quad - 0.5 * D * LOG_2PI


# ---------------------------------------------------------------------------
# Flow: faithful port of the PyTorch base-class interface.
# ---------------------------------------------------------------------------
class Flow:
    def __init__(self, prior=None, name="Flow"):
        self.name = name
        self.prior = prior

    def __call__(self, *args, **kargs):
        return self.sample(*args, **kargs)

    def sample(self, batchSize, prior=None):
        if prior is None:
            prior = self.prior
        assert prior is not None
        z = prior.sample(batchSize)
        logp = prior.logProbability(z)
        x, logp_ = self.inverse(z)
        return (x, logp - logp_)

    # TODO(synk): forward/inverse are abstract in the reference module; they have no
    # concrete compute to lower, so (as in PyTorch) they raise unless subclassed.
    def forward(self, x):
        raise NotImplementedError(str(type(self)))

    def inverse(self, z):
        raise NotImplementedError(str(type(self)))

    def logProbability(self, x):
        z, logp = self.forward(x)
        if self.prior is not None:
            return self.prior.logProbability(z) + logp
        return logp

    def save(self):
        # TODO(synk): state_dict save/load is framework plumbing, not kernel work.
        return {"log_scale": getattr(self, "log_scale", None)}

    def load(self, saveDict):
        if saveDict.get("log_scale", None) is not None:
            self.log_scale = saveDict["log_scale"]
            if hasattr(self, "_refresh_scales"):
                self._refresh_scales()
        return saveDict


class ScalingFlow(Flow):
    """Concrete flow: x = z * exp(s) (inverse), z = x * exp(-s) (forward).
    sample() / logProbability() are overridden with mathematically identical fused
    Pallas paths (single pass, exp(s) hoisted, reductions deferred)."""

    def __init__(self, event_shape, prior=None, name="ScalingFlow"):
        super().__init__(prior=prior, name=name)
        D = int(math.prod(event_shape))
        self.event_shape = tuple(event_shape)
        self.log_scale = 0.01 * jnp.arange(D, dtype=jnp.float32) / D - 0.005
        self._refresh_scales()

    def _refresh_scales(self):
        # exp(log_scale) is data independent -> computed ONCE here, never in a kernel
        self._scale = jnp.exp(self.log_scale).astype(jnp.float32)
        self._inv_scale = jnp.exp(-self.log_scale).astype(jnp.float32)
        self._sum_log_scale = jnp.sum(self.log_scale)

    # --- unfused primitives (log-det hoisted: it is data & batch independent) ---
    def forward(self, x):
        B = x.shape[0]
        z2d = affine_transform(x.reshape(B, -1), self._inv_scale)
        logdet = jnp.full((B,), -self._sum_log_scale, dtype=jnp.float32)
        return z2d.reshape((B,) + self.event_shape), logdet

    def inverse(self, z):
        B = z.shape[0]
        x2d = affine_transform(z.reshape(B, -1), self._scale)
        logdet = jnp.full((B,), self._sum_log_scale, dtype=jnp.float32)
        return x2d.reshape((B,) + self.event_shape), logdet

    # --- fused fast paths (same math as the base-class implementations) ---
    def sample(self, batchSize, prior=None):
        if prior is None:
            prior = self.prior
        assert prior is not None
        if not isinstance(prior, GaussianPrior):
            return super().sample(batchSize, prior)
        D = int(math.prod(self.event_shape))
        seed = prior.next_seed()
        try:
            # one kernel: z generated in-kernel (no (B,D) z HBM traffic),
            # x = z*exp(s) written once, sum(-0.5 z^2) accumulated in VMEM.
            x2d, quad = sample_scaled_gauss(seed, batchSize, self._scale)
            jax.block_until_ready(x2d)
        except Exception:
            # TODO(synk): conservative fallback (z via jax.random + unfused kernels).
            return super().sample(batchSize, prior)
        logp = quad - 0.5 * D * LOG_2PI          # prior.logProbability(z)
        logp_ = self._sum_log_scale              # log|det J| of inverse (hoisted)
        return x2d.reshape((batchSize,) + self.event_shape), logp - logp_

    def logProbability(self, x):
        if not isinstance(self.prior, GaussianPrior):
            return super().logProbability(x)
        B = x.shape[0]
        x2d = x.reshape(B, -1)
        D = x2d.shape[1]
        # one reduction kernel over x; z = x*exp(-s) is never materialized in HBM
        quad = scaled_gauss_quadratic(x2d, self._inv_scale)
        return quad - 0.5 * D * LOG_2PI - self._sum_log_scale

    def save(self):
        return {"log_scale": self.log_scale}


# ---------------------------------------------------------------------------
# Pure-JAX reference (correctness checks)
# ---------------------------------------------------------------------------
def _ref_gauss_logp(z2d):
    return jnp.sum(-0.5 * z2d * z2d - 0.5 * LOG_2PI, axis=-1)


if __name__ == "__main__":
    key = jax.random.PRNGKey(0)
    k_prior, k_x = jax.random.split(key)

    B, C, H, W = 2, 4, 16, 16
    event_shape = (C, H, W)

    prior = GaussianPrior(event_shape, k_prior)
    flow = ScalingFlow(event_shape, prior=prior)
    s = flow.log_scale

    # ---- sample path (fused in-kernel-RNG kernel) ----
    x_samp, logp_samp = flow.sample(B)
    jax.block_until_ready((x_samp, logp_samp))
    assert x_samp.shape == (B, C, H, W) and logp_samp.shape == (B,)
    z_rec = x_samp.reshape(B, -1) * jnp.exp(-s)
    ref_logp_samp = _ref_gauss_logp(z_rec) - jnp.sum(s)
    assert jnp.allclose(logp_samp, ref_logp_samp, rtol=1e-5, atol=1e-3)
    # loose sanity check that the generated z is standard normal (2048 samples)
    assert abs(float(jnp.mean(z_rec))) < 0.25
    assert 0.7 < float(jnp.std(z_rec)) < 1.3

    # ---- logProbability path (fused reduction) ----
    x = jax.random.normal(k_x, (B, C, H, W), dtype=jnp.float32)
    logp_x = flow.logProbability(x)
    jax.block_until_ready(logp_x)
    assert logp_x.shape == (B,)
    ref_logp_x = _ref_gauss_logp(x.reshape(B, -1) * jnp.exp(-s)) - jnp.sum(s)
    assert jnp.allclose(logp_x, ref_logp_x, rtol=1e-5, atol=1e-3)

    # ---- base-class (unfused forward + prior) path agrees with the fused path ----
    logp_x_base = Flow.logProbability(flow, x)
    jax.block_until_ready(logp_x_base)
    assert jnp.allclose(logp_x_base, logp_x, rtol=1e-5, atol=1e-3)

    # ---- forward / inverse round trip and hoisted log-dets ----
    z_fwd, ld_fwd = flow.forward(x)
    x_rt, ld_inv = flow.inverse(z_fwd)
    jax.block_until_ready((x_rt, ld_fwd, ld_inv))
    assert jnp.allclose(x_rt, x, rtol=1e-5, atol=1e-5)
    assert jnp.allclose(ld_fwd, -ld_inv, rtol=1e-6, atol=1e-6)

    # ---- prior log-density kernel ----
    z_p = prior.sample(B)
    lp_prior = prior.logProbability(z_p)
    jax.block_until_ready(lp_prior)
    assert jnp.allclose(lp_prior, _ref_gauss_logp(z_p.reshape(B, -1)), rtol=1e-5, atol=1e-3)

    print("KERNEL_OK")
</pallas_src>

<mosaic_0001>
module attributes {stable_mosaic.version = 11 : i64} {
  func.func @_sample_gauss_kernel(%arg0: i32, %arg1: i32, %arg2: memref<1xi32, #tpu.memory_space<smem>>, %arg3: memref<1x8x128xf32, #tpu.memory_space<vmem>>, %arg4: memref<2x8x128xf32, #tpu.memory_space<vmem>>, %arg5: memref<2x128xf32, #tpu.memory_space<vmem>>, %arg6: memref<2x8x128xf32, #tpu.memory_space<vmem>>) attributes {dimension_semantics = [#tpu.dimension_semantics<parallel>, #tpu.dimension_semantics<arbitrary>], iteration_bounds = array<i64: 1, 1>, scalar_prefetch = 1 : i64, scratch_operands = 1 : i64, tpu.core_type = #tpu.core_type<tc>, window_params = [{transform_indices = @transform_0, window_bounds = array<i64: 1, 8, 128>}, {transform_indices = @transform_1, window_bounds = array<i64: 2, 8, 128>}, {transform_indices = @transform_2, window_bounds = array<i64: 2, 128>}]} {
    %c0_i32 = arith.constant 0 : i32
    %0 = arith.cmpi eq, %arg1, %c0_i32 : i32
    %1 = arith.extui %0 : i1 to i32
    %c0_i32_0 = arith.constant 0 : i32
    %2 = arith.cmpi ne, %1, %c0_i32_0 : i32
    scf.if %2 {
      %cst_43 = arith.constant 0.000000e+00 : f32
      %100 = vector.broadcast %cst_43 : f32 to vector<2x8x128xf32>
      %c0_44 = arith.constant 0 : index
      %c0_45 = arith.constant 0 : index
      %c0_46 = arith.constant 0 : index
      %101 = vector.load %arg6[%c0_44, %c0_45, %c0_46] : memref<2x8x128xf32, #tpu.memory_space<vmem>>, vector<2x8x128xf32>
      tpu.vector_store %arg6[%c0_44, %c0_45, %c0_46], %100 {strides = array<i32>} : memref<2x8x128xf32, #tpu.memory_space<vmem>>, vector<2x8x128xf32>,
    } else {
    }
    %c0 = arith.constant 0 : index
    %3 = memref.load %arg2[%c0] : memref<1xi32, #tpu.memory_space<smem>>
    %c1000003_i32 = arith.constant 1000003 : i32
    %4 = arith.muli %arg0, %c1000003_i32 : i32
    %5 = arith.addi %3, %4 : i32
    %c19937_i32 = arith.constant 19937 : i32
    %6 = arith.muli %arg1, %c19937_i32 : i32
    %7 = arith.addi %5, %6 : i32
    "tpu.prng_set_seed_32"(%7) : (i32) -> ()
    %8 = "tpu.prng_random_bits"() : () -> vector<2x8x128xi32>
    %c8388607_i32 = arith.constant 8388607 : i32
    %9 = vector.broadcast %c8388607_i32 : i32 to vector<2x8x128xi32>
    %10 = arith.andi %8, %9 : vector<2x8x128xi32>
    %11 = arith.sitofp %10 : vector<2x8x128xi32> to vector<2x8x128xf32>
    %cst = arith.constant 5.000000e-01 : f32
    %12 = vector.broadcast %cst : f32 to vector<2x8x128xf32>
    %13 = arith.addf %11, %12 : vector<2x8x128xf32>
    %cst_1 = arith.constant 1.1920929E-7 : f32
    %14 = vector.broadcast %cst_1 : f32 to vector<2x8x128xf32>
    %15 = arith.mulf %13, %14 : vector<2x8x128xf32>
    %cst_2 = arith.constant 2.000000e+00 : f32
    %16 = vector.broadcast %cst_2 : f32 to vector<2x8x128xf32>
    %17 = arith.mulf %16, %15 : vector<2x8x128xf32>
    %cst_3 = arith.constant 1.000000e+00 : f32
    %18 = vector.broadcast %cst_3 : f32 to vector<2x8x128xf32>
    %19 = arith.subf %17, %18 : vector<2x8x128xf32>
    %cst_4 = arith.constant 1.000000e+00 : f32
    %20 = vector.broadcast %cst_4 : f32 to vector<2x8x128xf32>
    %21 = arith.subf %20, %19 : vector<2x8x128xf32>
    %cst_5 = arith.constant 1.000000e+00 : f32
    %22 = vector.broadcast %cst_5 : f32 to vector<2x8x128xf32>
    %23 = arith.addf %22, %19 : vector<2x8x128xf32>
    %24 = arith.mulf %21, %23 : vector<2x8x128xf32>
    %25 = math.log %24 : vector<2x8x128xf32>
    %cst_6 = arith.constant 0.000000e+00 : f32
    %26 = vector.broadcast %cst_6 : f32 to vector<2x8x128xf32>
    %27 = arith.subf %26, %25 : vector<2x8x128xf32>
    %cst_7 = arith.constant 2.500000e+00 : f32
    %28 = vector.broadcast %cst_7 : f32 to vector<2x8x128xf32>
    %29 = arith.subf %27, %28 : vector<2x8x128xf32>
    %cst_8 = arith.constant 2.81022636E-8 : f32
    %30 = vector.broadcast %cst_8 : f32 to vector<2x8x128xf32>
    %31 = arith.mulf %30, %29 : vector<2x8x128xf32>
    %cst_9 = arith.constant 3.43273939E-7 : f32
    %32 = vector.broadcast %cst_9 : f32 to vector<2x8x128xf32>
    %33 = arith.addf %31, %32 : vector<2x8x128xf32>
    %34 = arith.mulf %33, %29 : vector<2x8x128xf32>
    %cst_10 = arith.constant -3.5233877E-6 : f32
    %35 = vector.broadcast %cst_10 : f32 to vector<2x8x128xf32>
    %36 = arith.addf %34, %35 : vector<2x8x128xf32>
    %37 = arith.mulf %36, %29 : vector<2x8x128xf32>
    %cst_11 = arith.constant -4.39150654E-6 : f32
    %38 = vector.broadcast %cst_11 : f32 to vector<2x8x128xf32>
    %39 = arith.addf %37, %38 : vector<2x8x128xf32>
    %40 = arith.mulf %39, %29 : vector<2x8x128xf32>
    %cst_12 = arith.constant 2.1858087E-4 : f32
    %41 = vector.broadcast %cst_12 : f32 to vector<2x8x128xf32>
    %42 = arith.addf %40, %41 : vector<2x8x128xf32>
    %43 = arith.mulf %42, %29 : vector<2x8x128xf32>
    %cst_13 = arith.constant -0.00125372503 : f32
    %44 = vector.broadcast %cst_13 : f32 to vector<2x8x128xf32>
    %45 = arith.addf %43, %44 : vector<2x8x128xf32>
    %46 = arith.mulf %45, %29 : vector<2x8x128xf32>
    %cst_14 = arith.constant -0.00417768164 : f32
    %47 = vector.broadcast %cst_14 : f32 to vector<2x8x128xf32>
    %48 = arith.addf %46, %47 : vector<2x8x128xf32>
    %49 = arith.mulf %48, %29 : vector<2x8x128xf32>
    %cst_15 = arith.constant 0.246640727 : f32
    %50 = vector.broadcast %cst_15 : f32 to vector<2x8x128xf32>
    %51 = arith.addf %49, %50 : vector<2x8x128xf32>
    %52 = arith.mulf %51, %29 : vector<2x8x128xf32>
    %cst_16 = arith.constant 1.50140941 : f32
    %53 = vector.broadcast %cst_16 : f32 to vector<2x8x128xf32>
    %54 = arith.addf %52, %53 : vector<2x8x128xf32>
    %55 = math.sqrt %27 : vector<2x8x128xf32>
    %cst_17 = arith.constant 3.000000e+00 : f32
    %56 = vector.broadcast %cst_17 : f32 to vector<2x8x128xf32>
    %57 = arith.subf %55, %56 : vector<2x8x128xf32>
    %cst_18 = arith.constant -2.00214257E-4 : f32
    %58 = vector.broadcast %cst_18 : f32 to vector<2x8x128xf32>
    %59 = arith.mulf %58, %57 : vector<2x8x128xf32>
    %cst_19 = arith.constant 1.00950558E-4 : f32
    %60 = vector.broadcast %cst_19 : f32 to vector<2x8x128xf32>
    %61 = arith.addf %59, %60 : vector<2x8x128xf32>
    %62 = arith.mulf %61, %57 : vector<2x8x128xf32>
    %cst_20 = arith.constant 0.00134934322 : f32
    %63 = vector.broadcast %cst_20 : f32 to vector<2x8x128xf32>
    %64 = arith.addf %62, %63 : vector<2x8x128xf32>
    %65 = arith.mulf %64, %57 : vector<2x8x128xf32>
    %cst_21 = arith.constant -0.00367342844 : f32
    %66 = vector.broadcast %cst_21 : f32 to vector<2x8x128xf32>
    %67 = arith.addf %65, %66 : vector<2x8x128xf32>
    %68 = arith.mulf %67, %57 : vector<2x8x128xf32>
    %cst_22 = arith.constant 0.00573950773 : f32
    %69 = vector.broadcast %cst_22 : f32 to vector<2x8x128xf32>
    %70 = arith.addf %68, %69 : vector<2x8x128xf32>
    %71 = arith.mulf %70, %57 : vector<2x8x128xf32>
    %cst_23 = arith.constant -0.0076224613 : f32
    %72 = vector.broadcast %cst_23 : f32 to vector<2x8x128xf32>
    %73 = arith.addf %71, %72 : vector<2x8x128xf32>
    %74 = arith.mulf %73, %57 : vector<2x8x128xf32>
    %cst_24 = arith.constant 0.00943887047 : f32
    %75 = vector.broadcast %cst_24 : f32 to vector<2x8x128xf32>
    %76 = arith.addf %74, %75 : vector<2x8x128xf32>
    %77 = arith.mulf %76, %57 : vector<2x8x128xf32>
    %cst_25 = arith.constant 1.00167406 : f32
    %78 = vector.broadcast %cst_25 : f32 to vector<2x8x128xf32>
    %79 = arith.addf %77, %78 : vector<2x8x128xf32>
    %80 = arith.mulf %79, %57 : vector<2x8x128xf32>
    %cst_26 = arith.constant 2.83297682 : f32
    %81 = vector.broadcast %cst_26 : f32 to vector<2x8x128xf32>
    %82 = arith.addf %80, %81 : vector<2x8x128xf32>
    %cst_27 = arith.constant 5.000000e+00 : f32
    %83 = vector.broadcast %cst_27 : f32 to vector<2x8x128xf32>
    %84 = arith.cmpf olt, %27, %83 : vector<2x8x128xf32>
    %85 = arith.select %84, %54, %82 : vector<2x8x128xi1>, vector<2x8x128xf32>
    %cst_28 = arith.constant 1.41421354 : f32
    %86 = vector.broadcast %cst_28 : f32 to vector<2x8x128xf32>
    %87 = arith.mulf %86, %85 : vector<2x8x128xf32>
    %88 = arith.mulf %87, %19 : vector<2x8x128xf32>
    %c0_29 = arith.constant 0 : index
    %c0_30 = arith.constant 0 : index
    %c0_31 = arith.constant 0 : index
    %89 = vector.load %arg3[%c0_29, %c0_30, %c0_31] : memref<1x8x128xf32, #tpu.memory_space<vmem>>, vector<1x8x128xf32>
    %90 = vector.broadcast %89 : vector<1x8x128xf32> to vector<2x8x128xf32>
    %91 = arith.mulf %88, %90 : vector<2x8x128xf32>
    %c0_32 = arith.constant 0 : index
    %c0_33 = arith.constant 0 : index
    %c0_34 = arith.constant 0 : index
    %92 = vector.load %arg4[%c0_32, %c0_33, %c0_34] : memref<2x8x128xf32, #tpu.memory_space<vmem>>, vector<2x8x128xf32>
    tpu.vector_store %arg4[%c0_32, %c0_33, %c0_34], %91 {strides = array<i32>} : memref<2x8x128xf32, #tpu.memory_space<vmem>>, vector<2x8x128xf32>,
    %c0_35 = arith.constant 0 : index
    %c0_36 = arith.constant 0 : index
    %c0_37 = arith.constant 0 : index
    %93 = vector.load %arg6[%c0_35, %c0_36, %c0_37] : memref<2x8x128xf32, #tpu.memory_space<vmem>>, vector<2x8x128xf32>
    %94 = arith.mulf %88, %88 : vector<2x8x128xf32>
    %95 = arith.addf %93, %94 : vector<2x8x128xf32>
    %c0_38 = arith.constant 0 : index
    %c0_39 = arith.constant 0 : index
    %c0_40 = arith.constant 0 : index
    %96 = vector.load %arg6[%c0_38, %c0_39, %c0_40] : memref<2x8x128xf32, #tpu.memory_space<vmem>>, vector<2x8x128xf32>
    tpu.vector_store %arg6[%c0_38, %c0_39, %c0_40], %95 {strides = array<i32>} : memref<2x8x128xf32, #tpu.memory_space<vmem>>, vector<2x8x128xf32>,
    %c0_i32_41 = arith.constant 0 : i32
    %97 = arith.cmpi eq, %arg1, %c0_i32_41 : i32
    %98 = arith.extui %97 : i1 to i32
    %c0_i32_42 = arith.constant 0 : i32
    %99 = arith.cmpi ne, %98, %c0_i32_42 : i32
    scf.if %99 {
      %c0_43 = arith.constant 0 : index
      %c0_44 = arith.constant 0 : index
      %c0_45 = arith.constant 0 : index
      %100 = vector.load %arg6[%c0_43, %c0_44, %c0_45] : memref<2x8x128xf32, #tpu.memory_space<vmem>>, vector<2x8x128xf32>
      %cst_46 = arith.constant dense<0.000000e+00> : vector<2x128xf32>
      %101 = vector.multi_reduction <add>, %100, %cst_46 [1] : vector<2x8x128xf32> to vector<2x128xf32>
      %cst_47 = arith.constant -5.000000e-01 : f32
      %102 = vector.broadcast %cst_47 : f32 to vector<2x128xf32>
      %103 = arith.mulf %102, %101 : vector<2x128xf32>
      %c0_48 = arith.constant 0 : index
      %c0_49 = arith.constant 0 : index
      %104 = vector.load %arg5[%c0_48, %c0_49] : memref<2x128xf32, #tpu.memory_space<vmem>>, vector<2x128xf32>
      tpu.vector_store %arg5[%c0_48, %c0_49], %103 {strides = array<i32>} : memref<2x128xf32, #tpu.memory_space<vmem>>, vector<2x128xf32>,
    } else {
    }
    return
  }
  func.func @transform_0(%arg0: i32, %arg1: i32, %arg2: memref<1xi32, #tpu.memory_space<smem>>) -> (i32, i32, i32) {
    %c0_i32 = arith.constant 0 : i32
    %c0_i32_0 = arith.constant 0 : i32
    %c0_i32_1 = arith.constant 0 : i32
    return %c0_i32, %arg1, %c0_i32_0 : i32, i32, i32
  }
  func.func @transform_1(%arg0: i32, %arg1: i32, %arg2: memref<1xi32, #tpu.memory_space<smem>>) -> (i32, i32, i32) {
    %c0_i32 = arith.constant 0 : i32
    %c0_i32_0 = arith.constant 0 : i32
    return %arg0, %arg1, %c0_i32 : i32, i32, i32
  }
  func.func @transform_2(%arg0: i32, %arg1: i32, %arg2: memref<1xi32, #tpu.memory_space<smem>>) -> (i32, i32) {
    %c0_i32 = arith.constant 0 : i32
    %c0_i32_0 = arith.constant 0 : i32
    return %arg0, %c0_i32 : i32, i32
  }
}

module attributes {stable_mosaic.version = 11 : i64} {
  func.func @_scaled_gauss_kernel(%arg0: i32, %arg1: i32, %arg2: memref<1x8x128xf32, #tpu.memory_space<vmem>>, %arg3: memref<2x8x128xf32, #tpu.memory_space<vmem>>, %arg4: memref<2x128xf32, #tpu.memory_space<vmem>>, %arg5: memref<2x8x128xf32, #tpu.memory_space<vmem>>) attributes {dimension_semantics = [#tpu.dimension_semantics<parallel>, #tpu.dimension_semantics<arbitrary>], iteration_bounds = array<i64: 1, 1>, scalar_prefetch = 0 : i64, scratch_operands = 1 : i64, tpu.core_type = #tpu.core_type<tc>, window_params = [{transform_indices = @transform_0, window_bounds = array<i64: 1, 8, 128>}, {transform_indices = @transform_1, window_bounds = array<i64: 2, 8, 128>}, {transform_indices = @transform_2, window_bounds = array<i64: 2, 128>}]} {
    %c0_i32 = arith.constant 0 : i32
    %0 = arith.cmpi eq, %arg1, %c0_i32 : i32
    %1 = arith.extui %0 : i1 to i32
    %c0_i32_0 = arith.constant 0 : i32
    %2 = arith.cmpi ne, %1, %c0_i32_0 : i32
    scf.if %2 {
      %cst = arith.constant 0.000000e+00 : f32
      %14 = vector.broadcast %cst : f32 to vector<2x8x128xf32>
      %c0_14 = arith.constant 0 : index
      %c0_15 = arith.constant 0 : index
      %c0_16 = arith.constant 0 : index
      %15 = vector.load %arg5[%c0_14, %c0_15, %c0_16] : memref<2x8x128xf32, #tpu.memory_space<vmem>>, vector<2x8x128xf32>
      tpu.vector_store %arg5[%c0_14, %c0_15, %c0_16], %14 {strides = array<i32>} : memref<2x8x128xf32, #tpu.memory_space<vmem>>, vector<2x8x128xf32>,
    } else {
    }
    %c0 = arith.constant 0 : index
    %c0_1 = arith.constant 0 : index
    %c0_2 = arith.constant 0 : index
    %3 = vector.load %arg3[%c0, %c0_1, %c0_2] : memref<2x8x128xf32, #tpu.memory_space<vmem>>, vector<2x8x128xf32>
    %c0_3 = arith.constant 0 : index
    %c0_4 = arith.constant 0 : index
    %c0_5 = arith.constant 0 : index
    %4 = vector.load %arg2[%c0_3, %c0_4, %c0_5] : memref<1x8x128xf32, #tpu.memory_space<vmem>>, vector<1x8x128xf32>
    %5 = vector.broadcast %4 : vector<1x8x128xf32> to vector<2x8x128xf32>
    %6 = arith.mulf %3, %5 : vector<2x8x128xf32>
    %c0_6 = arith.constant 0 : index
    %c0_7 = arith.constant 0 : index
    %c0_8 = arith.constant 0 : index
    %7 = vector.load %arg5[%c0_6, %c0_7, %c0_8] : memref<2x8x128xf32, #tpu.memory_space<vmem>>, vector<2x8x128xf32>
    %8 = arith.mulf %6, %6 : vector<2x8x128xf32>
    %9 = arith.addf %7, %8 : vector<2x8x128xf32>
    %c0_9 = arith.constant 0 : index
    %c0_10 = arith.constant 0 : index
    %c0_11 = arith.constant 0 : index
    %10 = vector.load %arg5[%c0_9, %c0_10, %c0_11] : memref<2x8x128xf32, #tpu.memory_space<vmem>>, vector<2x8x128xf32>
    tpu.vector_store %arg5[%c0_9, %c0_10, %c0_11], %9 {strides = array<i32>} : memref<2x8x128xf32, #tpu.memory_space<vmem>>, vector<2x8x128xf32>,
    %c0_i32_12 = arith.constant 0 : i32
    %11 = arith.cmpi eq, %arg1, %c0_i32_12 : i32
    %12 = arith.extui %11 : i1 to i32
    %c0_i32_13 = arith.constant 0 : i32
    %13 = arith.cmpi ne, %12, %c0_i32_13 : i32
    scf.if %13 {
      %c0_14 = arith.constant 0 : index
      %c0_15 = arith.constant 0 : index
      %c0_16 = arith.constant 0 : index
      %14 = vector.load %arg5[%c0_14, %c0_15, %c0_16] : memref<2x8x128xf32, #tpu.memory_space<vmem>>, vector<2x8x128xf32>
      %cst = arith.constant dense<0.000000e+00> : vector<2x128xf32>
      %15 = vector.multi_reduction <add>, %14, %cst [1] : vector<2x8x128xf32> to vector<2x128xf32>
      %cst_17 = arith.constant -5.000000e-01 : f32
      %16 = vector.broadcast %cst_17 : f32 to vector<2x128xf32>
      %17 = arith.mulf %16, %15 : vector<2x128xf32>
      %c0_18 = arith.constant 0 : index
      %c0_19 = arith.constant 0 : index
      %18 = vector.load %arg4[%c0_18, %c0_19] : memref<2x128xf32, #tpu.memory_space<vmem>>, vector<2x128xf32>
      tpu.vector_store %arg4[%c0_18, %c0_19], %17 {strides = array<i32>} : memref<2x128xf32, #tpu.memory_space<vmem>>, vector<2x128xf32>,
    } else {
    }
    return
  }
  func.func @transform_0(%arg0: i32, %arg1: i32) -> (i32, i32, i32) {
    %c0_i32 = arith.constant 0 : i32
    %c0_i32_0 = arith.constant 0 : i32
    %c0_i32_1 = arith.constant 0 : i32
    return %c0_i32, %arg1, %c0_i32_0 : i32, i32, i32
  }
  func.func @transform_1(%arg0: i32, %arg1: i32) -> (i32, i32, i32) {
    %c0_i32 = arith.constant 0 : i32
    %c0_i32_0 = arith.constant 0 : i32
    return %arg0, %arg1, %c0_i32 : i32, i32, i32
  }
  func.func @transform_2(%arg0: i32, %arg1: i32) -> (i32, i32) {
    %c0_i32 = arith.constant 0 : i32
    %c0_i32_0 = arith.constant 0 : i32
    return %arg0, %c0_i32 : i32, i32
  }
}

</mosaic_0001>

<llo_original>
// kernel: tpu_custom_call.1
$region0: #{tpu_custom_call.1}
  #allocation0 [shape = 'u32[]', space=smem, size = 0x4, offset = 0x4, fixed_abs, tag = 'smem constant byte address 0x4 - core index']
  #allocation1 [shape = 'u32[144,128]{1,0:T(1,128)}', space=vmem, size = 0x12000, scoped, tag = 'internal scratch']
  #allocation2 [shape = 'f32[2,8,128]{2,1,0:T(8,128)}', space=vmem, size = 0x2000, scoped, tag = 'scratch operand']
  #allocation3 [shape = 's32[1]{0}', space=sflag, size = 0x4, scoped, tag = 'scoped memory for tpu_custom_call.1']
  #allocation4 [shape = 's32[1]{0:T(128)S(6)}', space=smem, size = 0x200, scoped, tag = 'prefetched SMEM operand 0']
  %s0 = inlined_call_operand.<no memory space> [shape: s32[1], index: 0, kind: input, shape index: {}]
  %s1 = inlined_call_operand.hbm [shape: f32[1,8,128], index: 1, kind: input, shape index: {}]
  %s2 = inlined_call_operand.hbm [shape: f32[2,8,128], index: 2, kind: output, shape index: {0}]
  %s3 = inlined_call_operand.hbm [shape: f32[2,128], index: 3, kind: output, shape index: {1}]
  %4 = xla_tuple %s2, %s3
  %s5 = sld [smem:[#allocation0]]
  $region34: #{tpu_custom_call.1} parent=0
    _
  %s7 = ssub.s32 1, %s5
  %s8 = scalar_select 0, %s7, %s5
  %9 = sst [smem:[#allocation4]] %s0
  $region1: #{tpu_custom_call.1} parent=0
    #allocation5 [shape = 'u8[4096]{0}', space=vmem, size = 0x1000, scoped, tag = 'input window, operand 1, single buffered']
    #allocation6 [shape = 's32[1]{0}', space=sflag, size = 0x4, scoped, tag = 'scoped memory for tpu_custom_call.1']
    #allocation7 [shape = 's32[1]{0}', space=sflag, size = 0x4, scoped, tag = 'scoped memory for tpu_custom_call.1']
    #allocation8 [shape = 'u8[8192]{0}', space=vmem, size = 0x2000, scoped, tag = 'output window, operand 0, single buffered']
    #allocation9 [shape = 'u8[1024]{0}', space=vmem, size = 0x400, scoped, tag = 'output window, operand 1, single buffered']
    #allocation10 [shape = 's32[1]{0}', space=sflag, size = 0x4, scoped, tag = 'scoped memory for tpu_custom_call.1']
    %10 = vsyncpa [#allocation6], 0
    %11 = vsyncpa [#allocation7], 0
    %12 = vsyncpa [#allocation10], 0
    // Predicated region
    $region2: #{tpu_custom_call.1} parent=1 // pred_check
      _
    $region3: #{tpu_custom_call.1} parent=1 // pred_check_branch
      %14 = sbr.rel (0) target = $region5
    $region4: #{tpu_custom_call.1} parent=1 // pred_region
      %s16 = ssub.s32 128, 128
      %17 = vsyncadd [#allocation6], %s16
      %s19 = sshll.u32 [#allocation5], 4
      %s20 = int_to_ptr.vmem [resolvable:$true] %s19
      %22 = dma.hbm_to_vmem [thread:$0]  %s1, 128, %s20, [#allocation6]
    $region5: #{tpu_custom_call.1} parent=1 // pred_fallthru
      _
    // Predicated region
    $region6: #{tpu_custom_call.1} parent=1 // pred_check
      _
    $region7: #{tpu_custom_call.1} parent=1 // pred_check_branch
      %24 = sbr.rel (0) target = $region9
    $region8: #{tpu_custom_call.1} parent=1 // pred_region
      %25 = dma.done [#allocation6], 128
    $region9: #{tpu_custom_call.1} parent=1 // pred_fallthru
      _
    %p26 = scmp.eq.s32.totalorder 0, 0
    // Predicated region
    $region10: #{tpu_custom_call.1} parent=1 // pred_check
      %p27 = pneg %p26
    $region11: #{tpu_custom_call.1} parent=1 // pred_check_branch
      %29 = sbr.rel (%p27) target = $region13
    $region12: #{tpu_custom_call.1} parent=1 // pred_region
      %30 = vst [vmem:[#allocation2] sm:$0xff] 0.0
      %31 = vst [vmem:[#allocation2 + $0x8] sm:$0xff] 0.0
    $region13: #{tpu_custom_call.1} parent=1 // pred_fallthru
      _
    %s32 = sld [smem:[#allocation4]]
    %s33 = smul.u32 0, 1000003
    %s34 = sadd.s32 %s32, %s33
    %s35 = smul.u32 0, 19937
    %s36 = sadd.s32 %s34, %s35
    %v37 = vlaneseq
    %v38 = vstv %s36
    %v39 = vxor.u32 %v38, %v38
    %v40 = vxor.u32 %v39, 466688986
    %v41 = vadd.s32 %v37, %v38
    %v42 = vadd.s32 %v41, %v41
    %v43 = vshll.u32 %v41, 13
    %v44 = vshrl.u32 %v41, 19
    %v45 = vor.u32 %v43, %v44
    %v46 = vxor.u32 %v42, %v45
    %v47 = vadd.s32 %v42, %v46
    %v48 = vshll.u32 %v46, 15
    %v49 = vshrl.u32 %v46, 17
    %v50 = vor.u32 %v48, %v49
    %v51 = vxor.u32 %v47, %v50
    %v52 = vadd.s32 %v47, %v51
    %v53 = vshll.u32 %v51, 26
    %v54 = vshrl.u32 %v51, 6
    %v55 = vor.u32 %v53, %v54
    %v56 = vxor.u32 %v52, %v55
    %v57 = vadd.s32 %v52, %v56
    %v58 = vshll.u32 %v56, 6
    %v59 = vshrl.u32 %v56, 26
    %v60 = vor.u32 %v58, %v59
    %v61 = vxor.u32 %v57, %v60
    %v62 = vadd.s32 %v57, %v38
    %v63 = vadd.s32 %v61, %v40
    %v64 = vadd.s32 %v63, 1
    %v65 = vadd.s32 %v62, %v64
    %v66 = vshll.u32 %v64, 17
    %v67 = vshrl.u32 %v64, 15
    %v68 = vor.u32 %v66, %v67
    %v69 = vxor.u32 %v65, %v68
    %v70 = vadd.s32 %v65, %v69
    %v71 = vshll.u32 %v69, 29
    %v72 = vshrl.u32 %v69, 3
    %v73 = vor.u32 %v71, %v72
    %v74 = vxor.u32 %v70, %v73
    %v75 = vadd.s32 %v70, %v74
    %v76 = vshll.u32 %v74, 16
    %v77 = vshrl.u32 %v74, 16
    %v78 = vor.u32 %v76, %v77
    %v79 = vxor.u32 %v75, %v78
    %v80 = vadd.s32 %v75, %v79
    %v81 = vshll.u32 %v79, 24
    %v82 = vshrl.u32 %v79, 8
    %v83 = vor.u32 %v81, %v82
    %v84 = vxor.u32 %v80, %v83
    %v85 = vadd.s32 %v80, %v40
    %v86 = vadd.s32 %v84, %v38
    %v87 = vadd.s32 %v86, 2
    %v88 = vadd.s32 %v85, %v87
    %v89 = vshll.u32 %v87, 13
    %v90 = vshrl.u32 %v87, 19
    %v91 = vor.u32 %v89, %v90
    %v92 = vxor.u32 %v88, %v91
    %v93 = vadd.s32 %v88, %v92
    %v94 = vshll.u32 %v92, 15
    %v95 = vshrl.u32 %v92, 17
    %v96 = vor.u32 %v94, %v95
    %v97 = vxor.u32 %v93, %v96
    %v98 = vadd.s32 %v93, %v97
    %v99 = vshll.u32 %v97, 26
    %v100 = vshrl.u32 %v97, 6
    %v101 = vor.u32 %v99, %v100
    %v102 = vxor.u32 %v98, %v101
    %v103 = vadd.s32 %v98, %v102
    %v104 = vshll.u32 %v102, 6
    %v105 = vshrl.u32 %v102, 26
    %v106 = vor.u32 %v104, %v105
    %v107 = vxor.u32 %v103, %v106
    %v108 = vadd.s32 %v103, %v38
    %v109 = vadd.s32 %v107, %v38
    %v110 = vadd.s32 %v109, 3
    %v111 = vadd.s32 %v108, %v110
    %v112 = vshll.u32 %v110, 17
    %v113 = vshrl.u32 %v110, 15
    %v114 = vor.u32 %v112, %v113
    %v115 = vxor.u32 %v111, %v114
    %v116 = vadd.s32 %v111, %v115
    %v117 = vshll.u32 %v115, 29
    %v118 = vshrl.u32 %v115, 3
    %v119 = vor.u32 %v117, %v118
    %v120 = vxor.u32 %v116, %v119
    %v121 = vadd.s32 %v116, %v120
    %v122 = vshll.u32 %v120, 16
    %v123 = vshrl.u32 %v120, 16
    %v124 = vor.u32 %v122, %v123
    %v125 = vxor.u32 %v121, %v124
    %v126 = vadd.s32 %v121, %v125
    %v127 = vshll.u32 %v125, 24
    %v128 = vshrl.u32 %v125, 8
    %v129 = vor.u32 %v127, %v128
    %v130 = vxor.u32 %v126, %v129
    %v131 = vadd.s32 %v126, %v38
    %v132 = vadd.s32 %v130, %v40
    %v133 = vadd.s32 %v132, 4
    %v134 = vadd.s32 %v131, %v133
    %v135 = vshll.u32 %v133, 13
    %v136 = vshrl.u32 %v133, 19
    %v137 = vor.u32 %v135, %v136
    %v138 = vxor.u32 %v134, %v137
    %v139 = vadd.s32 %v134, %v138
    %v140 = vshll.u32 %v138, 15
    %v141 = vshrl.u32 %v138, 17
    %v142 = vor.u32 %v140, %v141
    %v143 = vxor.u32 %v139, %v142
    %v144 = vadd.s32 %v139, %v143
    %v145 = vshll.u32 %v143, 26
    %v146 = vshrl.u32 %v143, 6
    %v147 = vor.u32 %v145, %v146
    %v148 = vxor.u32 %v144, %v147
    %v149 = vadd.s32 %v144, %v148
    %v150 = vshll.u32 %v148, 6
    %v151 = vshrl.u32 %v148, 26
    %v152 = vor.u32 %v150, %v151
    %v153 = vxor.u32 %v149, %v152
    %v154 = vadd.s32 %v149, %v40
    %v155 = vadd.s32 %v153, %v38
    %v156 = vadd.s32 %v155, 5
    %v157 = vxor.u32 %v154, %v156
    %158 = set.rngseed %v157
    %v159 = vrng
    %v160 = vrng
    %v161 = vand.u32 %v159, 8388607
    %v162 = vand.u32 %v160, 8388607
    %v163 = vcvt.s32.f32 %v161
    %v164 = vcvt.s32.f32 %v162
    %v165 = vadd.f32 %v163, 0.5
    %v166 = vadd.f32 %v164, 0.5
    %v167 = vmul.f32 %v165, 1.1920929e-07
    %v168 = vmul.f32 %v166, 1.1920929e-07
    %v169 = vmul.f32 %v167, 2.0
    %v170 = vmul.f32 %v168, 2.0
    %v171 = vsub.f32 %v169, 1.0
    %v172 = vsub.f32 %v170, 1.0
    %v173 = vsub.f32 1.0, %v171
    %v174 = vsub.f32 1.0, %v172
    %v175 = vadd.f32 %v171, 1.0
    %v176 = vadd.f32 %v172, 1.0
    %v177 = vmul.f32 %v173, %v175
    %v178 = vmul.f32 %v174, %v176
    %v179 = vlog2.pop %v177
    %v180 = vmul.f32 %v179, 0.6931472
    %v181 = vlog2.pop %v178
    %v182 = vmul.f32 %v181, 0.6931472
    %v183 = vsub.f32 0.0, %v180
    %v184 = vsub.f32 0.0, %v182
    %v185 = vsub.f32 %v183, 2.5
    %v186 = vsub.f32 %v184, 2.5
    %v187 = vmul.f32 %v185, 2.8102264e-08
    %v188 = vmul.f32 %v186, 2.8102264e-08
    %v189 = vadd.f32 %v187, 3.4327394e-07
    %v190 = vadd.f32 %v188, 3.4327394e-07
    %v191 = vmul.f32 %v189, %v185
    %v192 = vmul.f32 %v190, %v186
    %v193 = vadd.f32 %v191, -3.5233877e-06
    %v194 = vadd.f32 %v192, -3.5233877e-06
    %v195 = vmul.f32 %v193, %v185
    %v196 = vmul.f32 %v194, %v186
    %v197 = vadd.f32 %v195, -4.3915065e-06
    %v198 = vadd.f32 %v196, -4.3915065e-06
    %v199 = vmul.f32 %v197, %v185
    %v200 = vmul.f32 %v198, %v186
    %v201 = vadd.f32 %v199, 0.00021858087
    %v202 = vadd.f32 %v200, 0.00021858087
    %v203 = vmul.f32 %v201, %v185
    %v204 = vmul.f32 %v202, %v186
    %v205 = vadd.f32 %v203, -0.001253725
    %v206 = vadd.f32 %v204, -0.001253725
    %v207 = vmul.f32 %v205, %v185
    %v208 = vmul.f32 %v206, %v186
    %v209 = vadd.f32 %v207, -0.0041776816
    %v210 = vadd.f32 %v208, -0.0041776816
    %v211 = vmul.f32 %v209, %v185
    %v212 = vmul.f32 %v210, %v186
    %v213 = vadd.f32 %v211, 0.24664073
    %v214 = vadd.f32 %v212, 0.24664073
    %v215 = vmul.f32 %v213, %v185
    %v216 = vmul.f32 %v214, %v186
    %v217 = vadd.f32 %v215, 1.5014094
    %v218 = vadd.f32 %v216, 1.5014094
    %v219 = vrsqrt.pop %v183
    %v220 = vmul.f32 %v183, %v219
    %vm221 = vcmp.eq.f32.partialorder %v183, inf
    %v222 = vsel %vm221, %v183, %v220
    %vm223 = vcmp.eq.f32.partialorder %v183, 0.0
    %v224 = vand.u32 %v183, 2147483648
    %v225 = vsel %vm223, %v224, %v222
    %v226 = vrsqrt.pop %v184
    %v227 = vmul.f32 %v184, %v226
    %vm228 = vcmp.eq.f32.partialorder %v184, inf
    %v229 = vsel %vm228, %v184, %v227
    %vm230 = vcmp.eq.f32.partialorder %v184, 0.0
    %v231 = vand.u32 %v184, 2147483648
    %v232 = vsel %vm230, %v231, %v229
    %v233 = vsub.f32 %v225, 3.0
    %v234 = vsub.f32 %v232, 3.0
    %v235 = vmul.f32 %v233, -0.00020021426
    %v236 = vmul.f32 %v234, -0.00020021426
    %v237 = vadd.f32 %v235, 0.00010095056
    %v238 = vadd.f32 %v236, 0.00010095056
    %v239 = vmul.f32 %v237, %v233
    %v240 = vmul.f32 %v238, %v234
    %v241 = vadd.f32 %v239, 0.0013493432
    %v242 = vadd.f32 %v240, 0.0013493432
    %v243 = vmul.f32 %v241, %v233
    %v244 = vmul.f32 %v242, %v234
    %v245 = vadd.f32 %v243, -0.0036734284
    %v246 = vadd.f32 %v244, -0.0036734284
    %v247 = vmul.f32 %v245, %v233
    %v248 = vmul.f32 %v246, %v234
    %v249 = vadd.f32 %v247, 0.0057395077
    %v250 = vadd.f32 %v248, 0.0057395077
    %v251 = vmul.f32 %v249, %v233
    %v252 = vmul.f32 %v250, %v234
    %v253 = vadd.f32 %v251, -0.0076224613
    %v254 = vadd.f32 %v252, -0.0076224613
    %v255 = vmul.f32 %v253, %v233
    %v256 = vmul.f32 %v254, %v234
    %v257 = vadd.f32 %v255, 0.0094388705
    %v258 = vadd.f32 %v256, 0.0094388705
    %v259 = vmul.f32 %v257, %v233
    %v260 = vmul.f32 %v258, %v234
    %v261 = vadd.f32 %v259, 1.001674
    %v262 = vadd.f32 %v260, 1.001674
    %v263 = vmul.f32 %v261, %v233
    %v264 = vmul.f32 %v262, %v234
    %v265 = vadd.f32 %v263, 2.8329768
    %v266 = vadd.f32 %v264, 2.8329768
    %vm267 = vcmp.lt.f32.partialorder %v183, 5.0
    %vm268 = vcmp.lt.f32.partialorder %v184, 5.0
    %v269 = vsel %vm267, %v217, %v265
    %v270 = vsel %vm268, %v218, %v266
    %v271 = vmul.f32 %v269, 1.4142135
    %v272 = vmul.f32 %v270, 1.4142135
    %v273 = vmul.f32 %v271, %v171
    %v274 = vmul.f32 %v272, %v172
    %v275 = vld [vmem:[#allocation5] sm:$0xff]
    %v276 = vmul.f32 %v273, %v275
    %v277 = vmul.f32 %v274, %v275
    %278 = vst [vmem:[#allocation8] sm:$0xff] %v276
    %279 = vst [vmem:[#allocation8 + $0x8] sm:$0xff] %v277
    %v280 = vld [vmem:[#allocation2] sm:$0xff]
    %v281 = vld [vmem:[#allocation2 + $0x8] sm:$0xff]
    %v282 = vmul.f32 %v273, %v273
    %v283 = vmul.f32 %v274, %v274
    %v284 = vadd.f32 %v280, %v282
    %v285 = vadd.f32 %v281, %v283
    %286 = vst [vmem:[#allocation2] sm:$0xff] %v284
    %287 = vst [vmem:[#allocation2 + $0x8] sm:$0xff] %v285
    // Predicated region
    $region14: #{tpu_custom_call.1} parent=1 // pred_check
      %p288 = pneg %p26
    $region15: #{tpu_custom_call.1} parent=1 // pred_check_branch
      %290 = sbr.rel (%p288) target = $region17
    $region16: #{tpu_custom_call.1} parent=1 // pred_region
      %v291 = vld [vmem:[#allocation2] sm:$0xff]
      %v292 = vld [vmem:[#allocation2 + $0x8] sm:$0xff]
      %v293 = vrot.slane %v291, 4
      %v294 = vadd.f32 %v291, %v293
      %v295 = vrot.slane %v294, 2
      %v296 = vadd.f32 %v294, %v295
      %v297 = vrot.slane %v296, 1
      %v298 = vadd.f32 %v296, %v297
      %v299 = vrot.slane %v292, 4
      %v300 = vadd.f32 %v292, %v299
      %v301 = vrot.slane %v300, 2
      %v302 = vadd.f32 %v300, %v301
      %v303 = vrot.slane %v302, 1
      %v304 = vadd.f32 %v302, %v303
      %v305 = vmul.f32 %v298, -0.5
      %v306 = vmul.f32 %v304, -0.5
      %vm309 = vcmask 1041409
      %v310 = vsel %vm309, %v306, %v305
      %312 = vst [vmem:[#allocation9] sm:$0x3] %v310
    $region17: #{tpu_custom_call.1} parent=1 // pred_fallthru
      _
    // Predicated region
    $region18: #{tpu_custom_call.1} parent=1 // pred_check
      _
    $region19: #{tpu_custom_call.1} parent=1 // pred_check_branch
      %314 = sbr.rel (0) target = $region21
    $region20: #{tpu_custom_call.1} parent=1 // pred_region
      %s316 = ssub.s32 256, 256
      %317 = vsyncadd [#allocation7], %s316
      %s318 = sshll.u32 [#allocation8], 4
      %s319 = int_to_ptr.vmem [resolvable:$true] %s318
      %324 = dma.vmem_to_hbm [thread:$0]  %s319, 256, %s2, [#allocation7], 128, 128, 8
    $region21: #{tpu_custom_call.1} parent=1 // pred_fallthru
      _
    // Predicated region
    $region22: #{tpu_custom_call.1} parent=1 // pred_check
      _
    $region23: #{tpu_custom_call.1} parent=1 // pred_check_branch
      %326 = sbr.rel (0) target = $region25
    $region24: #{tpu_custom_call.1} parent=1 // pred_region
      %s328 = ssub.s32 32, 32
      %329 = vsyncadd [#allocation10], %s328
      %s331 = sshll.u32 [#allocation9], 4
      %s332 = int_to_ptr.vmem [resolvable:$true] %s331
      %334 = dma.vmem_to_hbm [thread:$0]  %s332, 32, %s3, [#allocation10]
    $region25: #{tpu_custom_call.1} parent=1 // pred_fallthru
      _
    // Predicated region
    $region26: #{tpu_custom_call.1} parent=1 // pred_check
      _
    $region27: #{tpu_custom_call.1} parent=1 // pred_check_branch
      %336 = sbr.rel (0) target = $region29
    $region28: #{tpu_custom_call.1} parent=1 // pred_region
      %337 = dma.done [#allocation7], 256
    $region29: #{tpu_custom_call.1} parent=1 // pred_fallthru
      _
    // Predicated region
    $region30: #{tpu_custom_call.1} parent=1 // pred_check
      _
    $region31: #{tpu_custom_call.1} parent=1 // pred_check_branch
      %339 = sbr.rel (0) target = $region33
    $region32: #{tpu_custom_call.1} parent=1 // pred_region
      %340 = dma.done [#allocation10], 32
    $region33: #{tpu_custom_call.1} parent=1 // pred_fallthru
      _
    %341 = vsyncpa [#allocation6], 1
    %342 = vsyncpa [#allocation7], 1
    %343 = vsyncpa [#allocation10], 1

// kernel: tpu_custom_call.1
$region0: #{tpu_custom_call.1}
  #allocation0 [shape = 'u32[]', space=smem, size = 0x4, offset = 0x4, fixed_abs, tag = 'smem constant byte address 0x4 - core index']
  #allocation1 [shape = 'u32[144,128]{1,0:T(1,128)}', space=vmem, size = 0x12000, scoped, tag = 'internal scratch']
  #allocation2 [shape = 'f32[2,8,128]{2,1,0:T(8,128)}', space=vmem, size = 0x2000, scoped, tag = 'scratch operand']
  %s0 = inlined_call_operand.hbm [shape: f32[1,8,128], index: 0, kind: input, shape index: {}]
  %s1 = inlined_call_operand.hbm [shape: f32[2,8,128], index: 1, kind: input, shape index: {}]
  %s2 = inlined_call_operand.hbm [shape: f32[2,128], index: 2, kind: output, shape index: {}]
  %s3 = sld [smem:[#allocation0]]
  $region34: #{tpu_custom_call.1} parent=0
    _
  %s5 = ssub.s32 1, %s3
  %s6 = scalar_select 0, %s5, %s3
  $region1: #{tpu_custom_call.1} parent=0
    #allocation3 [shape = 'u8[4096]{0}', space=vmem, size = 0x1000, scoped, tag = 'input window, operand 0, single buffered']
    #allocation4 [shape = 's32[1]{0}', space=sflag, size = 0x4, scoped, tag = 'scoped memory for tpu_custom_call.1']
    #allocation5 [shape = 's32[1]{0}', space=sflag, size = 0x4, scoped, tag = 'scoped memory for tpu_custom_call.1']
    #allocation6 [shape = 'u8[8192]{0}', space=vmem, size = 0x2000, scoped, tag = 'input window, operand 1, single buffered']
    #allocation7 [shape = 's32[1]{0}', space=sflag, size = 0x4, scoped, tag = 'scoped memory for tpu_custom_call.1']
    #allocation8 [shape = 'u8[1024]{0}', space=vmem, size = 0x400, scoped, tag = 'output window, operand 0, single buffered']
    %7 = vsyncpa [#allocation4], 0
    %8 = vsyncpa [#allocation7], 0
    %9 = vsyncpa [#allocation5], 0
    // Predicated region
    $region2: #{tpu_custom_call.1} parent=1 // pred_check
      _
    $region3: #{tpu_custom_call.1} parent=1 // pred_check_branch
      %11 = sbr.rel (0) target = $region5
    $region4: #{tpu_custom_call.1} parent=1 // pred_region
      %s13 = ssub.s32 128, 128
      %14 = vsyncadd [#allocation4], %s13
      %s16 = sshll.u32 [#allocation3], 4
      %s17 = int_to_ptr.vmem [resolvable:$true] %s16
      %19 = dma.hbm_to_vmem [thread:$0]  %s0, 128, %s17, [#allocation4]
    $region5: #{tpu_custom_call.1} parent=1 // pred_fallthru
      _
    // Predicated region
    $region6: #{tpu_custom_call.1} parent=1 // pred_check
      _
    $region7: #{tpu_custom_call.1} parent=1 // pred_check_branch
      %21 = sbr.rel (0) target = $region9
    $region8: #{tpu_custom_call.1} parent=1 // pred_region
      %s23 = ssub.s32 256, 256
      %24 = vsyncadd [#allocation7], %s23
      %s25 = sshll.u32 [#allocation6], 4
      %s26 = int_to_ptr.vmem [resolvable:$true] %s25
      %31 = dma.hbm_to_vmem [thread:$0]  %s1, 256, %s26, [#allocation7], 128, 128, 8
    $region9: #{tpu_custom_call.1} parent=1 // pred_fallthru
      _
    // Predicated region
    $region10: #{tpu_custom_call.1} parent=1 // pred_check
      _
    $region11: #{tpu_custom_call.1} parent=1 // pred_check_branch
      %33 = sbr.rel (0) target = $region13
    $region12: #{tpu_custom_call.1} parent=1 // pred_region
      %34 = dma.done [#allocation4], 128
    $region13: #{tpu_custom_call.1} parent=1 // pred_fallthru
      _
    // Predicated region
    $region14: #{tpu_custom_call.1} parent=1 // pred_check
      _
    $region15: #{tpu_custom_call.1} parent=1 // pred_check_branch
      %36 = sbr.rel (0) target = $region17
    $region16: #{tpu_custom_call.1} parent=1 // pred_region
      %37 = dma.done [#allocation7], 256
    $region17: #{tpu_custom_call.1} parent=1 // pred_fallthru
      _
    %p38 = scmp.eq.s32.totalorder 0, 0
    // Predicated region
    $region18: #{tpu_custom_call.1} parent=1 // pred_check
      %p39 = pneg %p38
    $region19: #{tpu_custom_call.1} parent=1 // pred_check_branch
      %41 = sbr.rel (%p39) target = $region21
    $region20: #{tpu_custom_call.1} parent=1 // pred_region
      %42 = vst [vmem:[#allocation2] sm:$0xff] 0.0
      %43 = vst [vmem:[#allocation2 + $0x8] sm:$0xff] 0.0
    $region21: #{tpu_custom_call.1} parent=1 // pred_fallthru
      _
    %v44 = vld [vmem:[#allocation6] sm:$0xff]
    %v45 = vld [vmem:[#allocation6 + $0x8] sm:$0xff]
    %v46 = vld [vmem:[#allocation3] sm:$0xff]
    %v47 = vmul.f32 %v44, %v46
    %v48 = vmul.f32 %v45, %v46
    %v49 = vld [vmem:[#allocation2] sm:$0xff]
    %v50 = vld [vmem:[#allocation2 + $0x8] sm:$0xff]
    %v51 = vmul.f32 %v47, %v47
    %v52 = vmul.f32 %v48, %v48
    %v53 = vadd.f32 %v49, %v51
    %v54 = vadd.f32 %v50, %v52
    %55 = vst [vmem:[#allocation2] sm:$0xff] %v53
    %56 = vst [vmem:[#allocation2 + $0x8] sm:$0xff] %v54
    // Predicated region
    $region22: #{tpu_custom_call.1} parent=1 // pred_check
      %p57 = pneg %p38
    $region23: #{tpu_custom_call.1} parent=1 // pred_check_branch
      %59 = sbr.rel (%p57) target = $region25
    $region24: #{tpu_custom_call.1} parent=1 // pred_region
      %v60 = vld [vmem:[#allocation2] sm:$0xff]
      %v61 = vld [vmem:[#allocation2 + $0x8] sm:$0xff]
      %v62 = vrot.slane %v60, 4
      %v63 = vadd.f32 %v60, %v62
      %v64 = vrot.slane %v63, 2
      %v65 = vadd.f32 %v63, %v64
      %v66 = vrot.slane %v65, 1
      %v67 = vadd.f32 %v65, %v66
      %v68 = vrot.slane %v61, 4
      %v69 = vadd.f32 %v61, %v68
      %v70 = vrot.slane %v69, 2
      %v71 = vadd.f32 %v69, %v70
      %v72 = vrot.slane %v71, 1
      %v73 = vadd.f32 %v71, %v72
      %v74 = vmul.f32 %v67, -0.5
      %v75 = vmul.f32 %v73, -0.5
      %vm78 = vcmask 1041409
      %v79 = vsel %vm78, %v75, %v74
      %81 = vst [vmem:[#allocation8] sm:$0x3] %v79
    $region25: #{tpu_custom_call.1} parent=1 // pred_fallthru
      _
    // Predicated region
    $region26: #{tpu_custom_call.1} parent=1 // pred_check
      _
    $region27: #{tpu_custom_call.1} parent=1 // pred_check_branch
      %83 = sbr.rel (0) target = $region29
    $region28: #{tpu_custom_call.1} parent=1 // pred_region
      %s85 = ssub.s32 32, 32
      %86 = vsyncadd [#allocation5], %s85
      %s88 = sshll.u32 [#allocation8], 4
      %s89 = int_to_ptr.vmem [resolvable:$true] %s88
      %91 = dma.vmem_to_hbm [thread:$0]  %s89, 32, %s2, [#allocation5]
    $region29: #{tpu_custom_call.1} parent=1 // pred_fallthru
      _
    // Predicated region
    $region30: #{tpu_custom_call.1} parent=1 // pred_check
      _
    $region31: #{tpu_custom_call.1} parent=1 // pred_check_branch
      %93 = sbr.rel (0) target = $region33
    $region32: #{tpu_custom_call.1} parent=1 // pred_region
      %94 = dma.done [#allocation5], 32
    $region33: #{tpu_custom_call.1} parent=1 // pred_fallthru
      _
    %95 = vsyncpa [#allocation4], 1
    %96 = vsyncpa [#allocation7], 1
    %97 = vsyncpa [#allocation5], 1

</llo_original>
